<compile_context>
chip_gen: v7x
topology: tpu7x:2x2x1
jax: 0.10.0
libtpu: 0.0.40
codegen_flags: <defaults>
</compile_context>

<pallas_src>
import functools
import math

import jax
import jax.numpy as jnp
from jax import lax
from jax.experimental import pallas as pl
from jax.experimental.pallas import tpu as pltpu


def _mha_kernel(x_ref, w_ref, b_ref, o_ref, qkv_scr, *, hno, hsz):
    """One grid step = one batch element, all heads.

    x_ref   : (1, slen, d)        bf16 input sequence for this batch element
    w_ref   : (3*embedd, d)       bf16 fused QKV weights (whole array, single VMEM copy),
                                  rows grouped per head [q_h; k_h; v_h], Q pre-scaled by 1/sqrt(hsz)
    b_ref   : (3*embedd, 1)       f32 fused biases (Q part pre-scaled), VMEM resident
    o_ref   : (1, hno, hsz, slen) output in the transposed layout the module returns
                                  (last dim = slen -> lane-dense store)
    qkv_scr : (3*embedd, slen)    VMEM scratch with the fused projection for the whole head
                                  loop (bf16 when hsz % 16 == 0, else f32)
    """
    x = x_ref[0]                     # (slen, d) bf16
    slen = x.shape[0]
    stride = 3 * hsz

    # Fused QKV projection in transposed layout (features on sublanes, seq on lanes):
    #   qkvT[n, s] = sum_d w[n, d] * x[s, d] + b[n]
    # Contract the last dim of BOTH operands -> no operand transpose (trans_b path).
    qkvT = lax.dot_general(
        w_ref[...], x,
        dimension_numbers=(((1,), (1,)), ((), ())),
        preferred_element_type=jnp.float32,
    ) + b_ref[...]                                            # (3E, slen) f32
    # Single cast into the resident scratch (bf16 only when head slices stay 16-row aligned).
    qkv_scr[...] = qkvT.astype(qkv_scr.dtype)

    # Causal mask shared by all heads (built once per grid step, not per head).
    row = lax.broadcasted_iota(jnp.int32, (slen, slen), 0)
    col = lax.broadcasted_iota(jnp.int32, (slen, slen), 1)
    causal = col <= row
    neg_big = jnp.float32(-1e30)     # large finite negative instead of -inf

    aligned = (hsz % 8) == 0         # static: 8-sublane-aligned head slices

    def _head_slice(start):
        if aligned:
            start = pl.multiple_of(start, 8)
        return qkv_scr[pl.ds(start, hsz), :]

    def head_body(h, carry):
        base = h * stride
        qT = _head_slice(base).astype(jnp.bfloat16)               # (hsz, slen), pre-scaled
        kT = _head_slice(base + hsz).astype(jnp.bfloat16)         # (hsz, slen)
        vT = _head_slice(base + 2 * hsz).astype(jnp.bfloat16)     # (hsz, slen)

        # scores[i, j] = sum_f qT[f, i] * kT[f, j]  — contract dim 0 of both operands
        # (trans_a on the MXU operand path, no explicit transpose op).
        s = lax.dot_general(qT, kT,
                            dimension_numbers=(((0,), (0,)), ((), ())),
                            preferred_element_type=jnp.float32)   # (slen, slen) f32
        s = jnp.where(causal, s, neg_big)

        # Numerically-stable softmax over the lane axis; EUP reciprocal, not a VALU divide.
        m = jnp.max(s, axis=-1, keepdims=True)
        p = jnp.exp(s - m)
        inv = pl.reciprocal(jnp.sum(p, axis=-1, keepdims=True), approx=True)
        p = (p * inv).astype(jnp.bfloat16)

        # outT[f, i] = sum_j vT[f, j] * p[i, j]  — contract last dims of both (trans_b).
        # This is directly the (hsz, slen) transposed layout the module returns, so the
        # store is lane-dense along slen and no wrapper transpose is needed.
        outT = lax.dot_general(vT, p,
                               dimension_numbers=(((1,), (1,)), ((), ())),
                               preferred_element_type=jnp.float32)  # (hsz, slen)
        o_ref[0, h] = outT.astype(o_ref.dtype)
        return carry

    # fori_loop bounds per-head live ranges; fully unrolled only for small head counts.
    lax.fori_loop(0, hno, head_body, 0, unroll=(hno <= 8))


def _derive_vmem_limit_bytes():
    """~3/4 of physical VMEM, capped at 100 MiB (≈96 MiB on v5e/v6e, ≈48 MiB on v7x)."""
    try:
        info = pltpu.get_tpu_info()
        cap = getattr(info, "vmem_capacity_bytes", None)
        if cap:
            return int(max(32 * 1024 * 1024, min((int(cap) * 3) // 4, 100 * 1024 * 1024)))
    except Exception:
        pass
    return 32 * 1024 * 1024  # conservative fallback, safe on every generation


def mha_forward(x, wq, bq, wk, bk, wv, bv, *, hno, out_dtype=jnp.float32):
    """x: (bsz, slen, d) float32.  Weights as in nn.Linear: (embedd, d), biases (embedd,)."""
    bsz, slen, d = x.shape
    embedd = wq.shape[0]
    hsz = embedd // hno
    assert hsz * hno == embedd
    scale = 1.0 / math.sqrt(float(hsz))

    # ---- one-time host-side weight prep ---------------------------------------------------
    # Fold 1/sqrt(hsz) into Q, fuse Q/K/V with per-head row grouping, keep the (3E, d)
    # orientation (kernel contracts on last dims), cast MXU operands to bf16.
    wq_h = (wq * scale).reshape(hno, hsz, d)
    wk_h = wk.reshape(hno, hsz, d)
    wv_h = wv.reshape(hno, hsz, d)
    w_fused = jnp.concatenate([wq_h, wk_h, wv_h], axis=1).reshape(3 * embedd, d)
    w_fused = w_fused.astype(jnp.bfloat16)

    bq_h = (bq * scale).reshape(hno, hsz)
    bk_h = bk.reshape(hno, hsz)
    bv_h = bv.reshape(hno, hsz)
    b_fused = jnp.concatenate([bq_h, bk_h, bv_h], axis=1).reshape(3 * embedd, 1)
    b_fused = b_fused.astype(jnp.float32)

    x_bf16 = x.astype(jnp.bfloat16)
    # ----------------------------------------------------------------------------------------

    # bf16 projection scratch only when per-head sublane slices stay 16-row (packed) aligned.
    scr_dtype = jnp.bfloat16 if (hsz % 16 == 0) else jnp.float32

    kernel = functools.partial(_mha_kernel, hno=hno, hsz=hsz)

    value_t = pl.pallas_call(
        kernel,
        out_shape=jax.ShapeDtypeStruct((bsz, hno, hsz, slen), out_dtype),
        grid_spec=pltpu.PrefetchScalarGridSpec(
            num_scalar_prefetch=0,
            grid=(bsz,),
            in_specs=[
                # Per-batch-element input block (pipelined / double-buffered).
                pl.BlockSpec((1, slen, d), lambda b: (b, 0, 0)),
                # Grid-invariant fused weights/bias: whole array, single VMEM copy,
                # never re-fetched across the grid (supersedes pl.Buffered(1)).
                pl.BlockSpec(memory_space=pltpu.MemorySpace.VMEM),
                pl.BlockSpec(memory_space=pltpu.MemorySpace.VMEM),
            ],
            out_specs=pl.BlockSpec((1, hno, hsz, slen), lambda b: (b, 0, 0, 0)),
            scratch_shapes=[pltpu.VMEM((3 * embedd, slen), scr_dtype)],
        ),
        compiler_params=pltpu.CompilerParams(
            dimension_semantics=("parallel",),              # batch shards across TCs (v7x)
            vmem_limit_bytes=_derive_vmem_limit_bytes(),    # per-generation VMEM sizing
        ),
    )(x_bf16, w_fused, b_fused)

    # PyTorch does value.transpose(-2, -1).reshape(bsz, slen, -1).  value_t already carries the
    # post-transpose (bsz, hno, hsz, slen) layout, so only a free row-major reshape remains.
    return value_t.reshape(bsz, slen, embedd)


def _reference(x, wq, bq, wk, bk, wv, bv, hno):
    """Pure-JAX f32 mirror of the PyTorch forward, for correctness checking."""
    bsz, slen, d = x.shape
    embedd = wq.shape[0]
    hsz = embedd // hno
    q = x @ wq.T + bq
    k = x @ wk.T + bk
    v = x @ wv.T + bv
    q = q.reshape(bsz, slen, hno, hsz).transpose(0, 2, 1, 3)
    k = k.reshape(bsz, slen, hno, hsz).transpose(0, 2, 1, 3)
    v = v.reshape(bsz, slen, hno, hsz).transpose(0, 2, 1, 3)
    s = jnp.einsum("bhqe,bhke->bhqk", q, k) / math.sqrt(hsz)
    mask = jnp.tril(jnp.ones((slen, slen), dtype=bool))[None, None]
    s = jnp.where(mask, s, -jnp.inf)
    p = jax.nn.softmax(s, axis=-1)
    val = jnp.einsum("bhqk,bhke->bhqe", p, v)
    return jnp.transpose(val, (0, 1, 3, 2)).reshape(bsz, slen, -1)


if __name__ == "__main__":
    # Small shapes consistent with the module: input=32, embedd=32, hno=4, output=16
    bsz, slen, d_in = 2, 8, 32
    embedd, hno = 32, 4

    key = jax.random.PRNGKey(0)
    kx, kq, kbq, kk, kbk, kv, kbv = jax.random.split(key, 7)

    bound = 1.0 / math.sqrt(d_in)
    x = jax.random.normal(kx, (bsz, slen, d_in), dtype=jnp.float32)
    wq = jax.random.uniform(kq, (embedd, d_in), jnp.float32, -bound, bound)
    bq = jax.random.uniform(kbq, (embedd,), jnp.float32, -bound, bound)
    wk = jax.random.uniform(kk, (embedd, d_in), jnp.float32, -bound, bound)
    bk = jax.random.uniform(kbk, (embedd,), jnp.float32, -bound, bound)
    wv = jax.random.uniform(kv, (embedd, d_in), jnp.float32, -bound, bound)
    bv = jax.random.uniform(kbv, (embedd,), jnp.float32, -bound, bound)

    out = mha_forward(x, wq, bq, wk, bk, wv, bv, hno=hno)
    out = jax.block_until_ready(out)

    ref = _reference(x, wq, bq, wk, bk, wv, bv, hno)
    assert out.shape == (bsz, slen, embedd), out.shape
    # Tolerance relaxed vs. the pure-f32 reference: the kernel runs its matmuls in bf16
    # (f32 accumulation) and uses the approximate EUP reciprocal for the softmax denominator.
    assert jnp.allclose(out, ref, atol=5e-2, rtol=5e-2), float(jnp.max(jnp.abs(out - ref)))

    print("KERNEL_OK")
</pallas_src>

<mosaic_0001>
module attributes {stable_mosaic.version = 11 : i64} {
  func.func @_mha_kernel(%arg0: i32, %arg1: memref<1x8x32xbf16, #tpu.memory_space<vmem>>, %arg2: memref<96x32xbf16, #tpu.memory_space<vmem>>, %arg3: memref<96x1xf32, #tpu.memory_space<vmem>>, %arg4: memref<1x4x8x8xf32, #tpu.memory_space<vmem>>, %arg5: memref<96x8xf32, #tpu.memory_space<vmem>>) attributes {dimension_semantics = [#tpu.dimension_semantics<parallel>], iteration_bounds = array<i64: 2>, scalar_prefetch = 0 : i64, scratch_operands = 1 : i64, tpu.core_type = #tpu.core_type<tc>, window_params = [{transform_indices = @transform_0, window_bounds = array<i64: 1, 8, 32>}, {pipeline_mode = #tpu.pipeline_mode<synchronous>, transform_indices = @transform_1, window_bounds = array<i64: 96, 32>}, {pipeline_mode = #tpu.pipeline_mode<synchronous>, transform_indices = @transform_2, window_bounds = array<i64: 96, 1>}, {transform_indices = @transform_3, window_bounds = array<i64: 1, 4, 8, 8>}]} {
    %c0 = arith.constant 0 : index
    %c0_0 = arith.constant 0 : index
    %c0_1 = arith.constant 0 : index
    %0 = vector.load %arg1[%c0, %c0_0, %c0_1] : memref<1x8x32xbf16, #tpu.memory_space<vmem>>, vector<1x8x32xbf16>
    %1 = vector.shape_cast %0 : vector<1x8x32xbf16> to vector<8x32xbf16>
    %c0_2 = arith.constant 0 : index
    %c0_3 = arith.constant 0 : index
    %2 = vector.load %arg2[%c0_2, %c0_3] : memref<96x32xbf16, #tpu.memory_space<vmem>>, vector<96x32xbf16>
    %cst = arith.constant dense<0.000000e+00> : vector<96x8xf32>
    %3 = tpu.matmul %2, %1, %cst {dimension_numbers = #tpu.dot_dimension_numbers<[1], [1], [0], [0], [0, 0, 1, 0], [], []>} : vector<96x32xbf16>, vector<8x32xbf16>, vector<96x8xf32> -> vector<96x8xf32>
    %c0_4 = arith.constant 0 : index
    %c0_5 = arith.constant 0 : index
    %4 = vector.load %arg3[%c0_4, %c0_5] : memref<96x1xf32, #tpu.memory_space<vmem>>, vector<96x1xf32>
    %5 = vector.broadcast %4 : vector<96x1xf32> to vector<96x8xf32>
    %6 = arith.addf %3, %5 : vector<96x8xf32>
    %c0_6 = arith.constant 0 : index
    %c0_7 = arith.constant 0 : index
    %7 = vector.load %arg5[%c0_6, %c0_7] : memref<96x8xf32, #tpu.memory_space<vmem>>, vector<96x8xf32>
    tpu.vector_store %arg5[%c0_6, %c0_7], %6 {strides = array<i32>} : memref<96x8xf32, #tpu.memory_space<vmem>>, vector<96x8xf32>,
    %8 = tpu.iota {dimensions = array<i32: 0>} : vector<8x8xi32>
    %9 = tpu.iota {dimensions = array<i32: 1>} : vector<8x8xi32>
    %10 = arith.cmpi sle, %9, %8 : vector<8x8xi32>
    %cst_8 = arith.constant -1.000000e+30 : f32
    %c0_i32 = arith.constant 0 : i32
    %c24_i32 = arith.constant 24 : i32
    %11 = arith.muli %c0_i32, %c24_i32 : i32
    %12 = tpu.assume_multiple %11, 8 : i32
    %13 = arith.index_cast %12 : i32 to index
    %c0_9 = arith.constant 0 : index
    %14 = vector.load %arg5[%13, %c0_9] : memref<96x8xf32, #tpu.memory_space<vmem>>, vector<8x8xf32>
    %15 = arith.truncf %14 : vector<8x8xf32> to vector<8x8xbf16>
    %c8_i32 = arith.constant 8 : i32
    %16 = arith.addi %11, %c8_i32 : i32
    %17 = tpu.assume_multiple %16, 8 : i32
    %18 = arith.index_cast %17 : i32 to index
    %c0_10 = arith.constant 0 : index
    %19 = vector.load %arg5[%18, %c0_10] : memref<96x8xf32, #tpu.memory_space<vmem>>, vector<8x8xf32>
    %20 = arith.truncf %19 : vector<8x8xf32> to vector<8x8xbf16>
    %c16_i32 = arith.constant 16 : i32
    %21 = arith.addi %11, %c16_i32 : i32
    %22 = tpu.assume_multiple %21, 8 : i32
    %23 = arith.index_cast %22 : i32 to index
    %c0_11 = arith.constant 0 : index
    %24 = vector.load %arg5[%23, %c0_11] : memref<96x8xf32, #tpu.memory_space<vmem>>, vector<8x8xf32>
    %25 = arith.truncf %24 : vector<8x8xf32> to vector<8x8xbf16>
    %cst_12 = arith.constant dense<0.000000e+00> : vector<8x8xf32>
    %26 = tpu.matmul %15, %20, %cst_12 {dimension_numbers = #tpu.dot_dimension_numbers<[0], [0], [1], [1], [0, 1, 1, 1], [], []>} : vector<8x8xbf16>, vector<8x8xbf16>, vector<8x8xf32> -> vector<8x8xf32>
    %27 = vector.broadcast %cst_8 : f32 to vector<8x8xf32>
    %28 = arith.select %10, %26, %27 : vector<8x8xi1>, vector<8x8xf32>
    %cst_13 = arith.constant dense<0xFF800000> : vector<8xf32>
    %29 = vector.multi_reduction <maximumf>, %28, %cst_13 [1] : vector<8x8xf32> to vector<8xf32>
    %30 = vector.shape_cast %29 : vector<8xf32> to vector<8x1xf32>
    %31 = vector.broadcast %30 : vector<8x1xf32> to vector<8x8xf32>
    %32 = arith.subf %28, %31 : vector<8x8xf32>
    %33 = math.exp %32 : vector<8x8xf32>
    %cst_14 = arith.constant dense<0.000000e+00> : vector<8xf32>
    %34 = vector.multi_reduction <add>, %33, %cst_14 [1] : vector<8x8xf32> to vector<8xf32>
    %35 = vector.shape_cast %34 : vector<8xf32> to vector<8x1xf32>
    %36 = tpu.reciprocal %35 {approx = true} : vector<8x1xf32> -> vector<8x1xf32>
    %37 = vector.broadcast %36 : vector<8x1xf32> to vector<8x8xf32>
    %38 = arith.mulf %33, %37 : vector<8x8xf32>
    %39 = arith.truncf %38 : vector<8x8xf32> to vector<8x8xbf16>
    %cst_15 = arith.constant dense<0.000000e+00> : vector<8x8xf32>
    %40 = tpu.matmul %25, %39, %cst_15 {dimension_numbers = #tpu.dot_dimension_numbers<[1], [1], [0], [0], [0, 0, 1, 0], [], []>} : vector<8x8xbf16>, vector<8x8xbf16>, vector<8x8xf32> -> vector<8x8xf32>
    %c0_16 = arith.constant 0 : index
    %41 = arith.index_cast %c0_i32 : i32 to index
    %c0_17 = arith.constant 0 : index
    %c0_18 = arith.constant 0 : index
    %42 = vector.load %arg4[%c0_16, %41, %c0_17, %c0_18] : memref<1x4x8x8xf32, #tpu.memory_space<vmem>>, vector<1x1x8x8xf32>
    %43 = vector.shape_cast %42 : vector<1x1x8x8xf32> to vector<8x8xf32>
    %44 = vector.shape_cast %40 : vector<8x8xf32> to vector<1x1x8x8xf32>
    tpu.vector_store %arg4[%c0_16, %41, %c0_17, %c0_18], %44 {strides = array<i32>} : memref<1x4x8x8xf32, #tpu.memory_space<vmem>>, vector<1x1x8x8xf32>,
    %c1_i32 = arith.constant 1 : i32
    %c24_i32_19 = arith.constant 24 : i32
    %45 = arith.muli %c1_i32, %c24_i32_19 : i32
    %46 = tpu.assume_multiple %45, 8 : i32
    %47 = arith.index_cast %46 : i32 to index
    %c0_20 = arith.constant 0 : index
    %48 = vector.load %arg5[%47, %c0_20] : memref<96x8xf32, #tpu.memory_space<vmem>>, vector<8x8xf32>
    %49 = arith.truncf %48 : vector<8x8xf32> to vector<8x8xbf16>
    %c8_i32_21 = arith.constant 8 : i32
    %50 = arith.addi %45, %c8_i32_21 : i32
    %51 = tpu.assume_multiple %50, 8 : i32
    %52 = arith.index_cast %51 : i32 to index
    %c0_22 = arith.constant 0 : index
    %53 = vector.load %arg5[%52, %c0_22] : memref<96x8xf32, #tpu.memory_space<vmem>>, vector<8x8xf32>
    %54 = arith.truncf %53 : vector<8x8xf32> to vector<8x8xbf16>
    %c16_i32_23 = arith.constant 16 : i32
    %55 = arith.addi %45, %c16_i32_23 : i32
    %56 = tpu.assume_multiple %55, 8 : i32
    %57 = arith.index_cast %56 : i32 to index
    %c0_24 = arith.constant 0 : index
    %58 = vector.load %arg5[%57, %c0_24] : memref<96x8xf32, #tpu.memory_space<vmem>>, vector<8x8xf32>
    %59 = arith.truncf %58 : vector<8x8xf32> to vector<8x8xbf16>
    %cst_25 = arith.constant dense<0.000000e+00> : vector<8x8xf32>
    %60 = tpu.matmul %49, %54, %cst_25 {dimension_numbers = #tpu.dot_dimension_numbers<[0], [0], [1], [1], [0, 1, 1, 1], [], []>} : vector<8x8xbf16>, vector<8x8xbf16>, vector<8x8xf32> -> vector<8x8xf32>
    %61 = vector.broadcast %cst_8 : f32 to vector<8x8xf32>
    %62 = arith.select %10, %60, %61 : vector<8x8xi1>, vector<8x8xf32>
    %cst_26 = arith.constant dense<0xFF800000> : vector<8xf32>
    %63 = vector.multi_reduction <maximumf>, %62, %cst_26 [1] : vector<8x8xf32> to vector<8xf32>
    %64 = vector.shape_cast %63 : vector<8xf32> to vector<8x1xf32>
    %65 = vector.broadcast %64 : vector<8x1xf32> to vector<8x8xf32>
    %66 = arith.subf %62, %65 : vector<8x8xf32>
    %67 = math.exp %66 : vector<8x8xf32>
    %cst_27 = arith.constant dense<0.000000e+00> : vector<8xf32>
    %68 = vector.multi_reduction <add>, %67, %cst_27 [1] : vector<8x8xf32> to vector<8xf32>
    %69 = vector.shape_cast %68 : vector<8xf32> to vector<8x1xf32>
    %70 = tpu.reciprocal %69 {approx = true} : vector<8x1xf32> -> vector<8x1xf32>
    %71 = vector.broadcast %70 : vector<8x1xf32> to vector<8x8xf32>
    %72 = arith.mulf %67, %71 : vector<8x8xf32>
    %73 = arith.truncf %72 : vector<8x8xf32> to vector<8x8xbf16>
    %cst_28 = arith.constant dense<0.000000e+00> : vector<8x8xf32>
    %74 = tpu.matmul %59, %73, %cst_28 {dimension_numbers = #tpu.dot_dimension_numbers<[1], [1], [0], [0], [0, 0, 1, 0], [], []>} : vector<8x8xbf16>, vector<8x8xbf16>, vector<8x8xf32> -> vector<8x8xf32>
    %c0_29 = arith.constant 0 : index
    %75 = arith.index_cast %c1_i32 : i32 to index
    %c0_30 = arith.constant 0 : index
    %c0_31 = arith.constant 0 : index
    %76 = vector.load %arg4[%c0_29, %75, %c0_30, %c0_31] : memref<1x4x8x8xf32, #tpu.memory_space<vmem>>, vector<1x1x8x8xf32>
    %77 = vector.shape_cast %76 : vector<1x1x8x8xf32> to vector<8x8xf32>
    %78 = vector.shape_cast %74 : vector<8x8xf32> to vector<1x1x8x8xf32>
    tpu.vector_store %arg4[%c0_29, %75, %c0_30, %c0_31], %78 {strides = array<i32>} : memref<1x4x8x8xf32, #tpu.memory_space<vmem>>, vector<1x1x8x8xf32>,
    %c2_i32 = arith.constant 2 : i32
    %c24_i32_32 = arith.constant 24 : i32
    %79 = arith.muli %c2_i32, %c24_i32_32 : i32
    %80 = tpu.assume_multiple %79, 8 : i32
    %81 = arith.index_cast %80 : i32 to index
    %c0_33 = arith.constant 0 : index
    %82 = vector.load %arg5[%81, %c0_33] : memref<96x8xf32, #tpu.memory_space<vmem>>, vector<8x8xf32>
    %83 = arith.truncf %82 : vector<8x8xf32> to vector<8x8xbf16>
    %c8_i32_34 = arith.constant 8 : i32
    %84 = arith.addi %79, %c8_i32_34 : i32
    %85 = tpu.assume_multiple %84, 8 : i32
    %86 = arith.index_cast %85 : i32 to index
    %c0_35 = arith.constant 0 : index
    %87 = vector.load %arg5[%86, %c0_35] : memref<96x8xf32, #tpu.memory_space<vmem>>, vector<8x8xf32>
    %88 = arith.truncf %87 : vector<8x8xf32> to vector<8x8xbf16>
    %c16_i32_36 = arith.constant 16 : i32
    %89 = arith.addi %79, %c16_i32_36 : i32
    %90 = tpu.assume_multiple %89, 8 : i32
    %91 = arith.index_cast %90 : i32 to index
    %c0_37 = arith.constant 0 : index
    %92 = vector.load %arg5[%91, %c0_37] : memref<96x8xf32, #tpu.memory_space<vmem>>, vector<8x8xf32>
    %93 = arith.truncf %92 : vector<8x8xf32> to vector<8x8xbf16>
    %cst_38 = arith.constant dense<0.000000e+00> : vector<8x8xf32>
    %94 = tpu.matmul %83, %88, %cst_38 {dimension_numbers = #tpu.dot_dimension_numbers<[0], [0], [1], [1], [0, 1, 1, 1], [], []>} : vector<8x8xbf16>, vector<8x8xbf16>, vector<8x8xf32> -> vector<8x8xf32>
    %95 = vector.broadcast %cst_8 : f32 to vector<8x8xf32>
    %96 = arith.select %10, %94, %95 : vector<8x8xi1>, vector<8x8xf32>
    %cst_39 = arith.constant dense<0xFF800000> : vector<8xf32>
    %97 = vector.multi_reduction <maximumf>, %96, %cst_39 [1] : vector<8x8xf32> to vector<8xf32>
    %98 = vector.shape_cast %97 : vector<8xf32> to vector<8x1xf32>
    %99 = vector.broadcast %98 : vector<8x1xf32> to vector<8x8xf32>
    %100 = arith.subf %96, %99 : vector<8x8xf32>
    %101 = math.exp %100 : vector<8x8xf32>
    %cst_40 = arith.constant dense<0.000000e+00> : vector<8xf32>
    %102 = vector.multi_reduction <add>, %101, %cst_40 [1] : vector<8x8xf32> to vector<8xf32>
    %103 = vector.shape_cast %102 : vector<8xf32> to vector<8x1xf32>
    %104 = tpu.reciprocal %103 {approx = true} : vector<8x1xf32> -> vector<8x1xf32>
    %105 = vector.broadcast %104 : vector<8x1xf32> to vector<8x8xf32>
    %106 = arith.mulf %101, %105 : vector<8x8xf32>
    %107 = arith.truncf %106 : vector<8x8xf32> to vector<8x8xbf16>
    %cst_41 = arith.constant dense<0.000000e+00> : vector<8x8xf32>
    %108 = tpu.matmul %93, %107, %cst_41 {dimension_numbers = #tpu.dot_dimension_numbers<[1], [1], [0], [0], [0, 0, 1, 0], [], []>} : vector<8x8xbf16>, vector<8x8xbf16>, vector<8x8xf32> -> vector<8x8xf32>
    %c0_42 = arith.constant 0 : index
    %109 = arith.index_cast %c2_i32 : i32 to index
    %c0_43 = arith.constant 0 : index
    %c0_44 = arith.constant 0 : index
    %110 = vector.load %arg4[%c0_42, %109, %c0_43, %c0_44] : memref<1x4x8x8xf32, #tpu.memory_space<vmem>>, vector<1x1x8x8xf32>
    %111 = vector.shape_cast %110 : vector<1x1x8x8xf32> to vector<8x8xf32>
    %112 = vector.shape_cast %108 : vector<8x8xf32> to vector<1x1x8x8xf32>
    tpu.vector_store %arg4[%c0_42, %109, %c0_43, %c0_44], %112 {strides = array<i32>} : memref<1x4x8x8xf32, #tpu.memory_space<vmem>>, vector<1x1x8x8xf32>,
    %c3_i32 = arith.constant 3 : i32
    %c24_i32_45 = arith.constant 24 : i32
    %113 = arith.muli %c3_i32, %c24_i32_45 : i32
    %114 = tpu.assume_multiple %113, 8 : i32
    %115 = arith.index_cast %114 : i32 to index
    %c0_46 = arith.constant 0 : index
    %116 = vector.load %arg5[%115, %c0_46] : memref<96x8xf32, #tpu.memory_space<vmem>>, vector<8x8xf32>
    %117 = arith.truncf %116 : vector<8x8xf32> to vector<8x8xbf16>
    %c8_i32_47 = arith.constant 8 : i32
    %118 = arith.addi %113, %c8_i32_47 : i32
    %119 = tpu.assume_multiple %118, 8 : i32
    %120 = arith.index_cast %119 : i32 to index
    %c0_48 = arith.constant 0 : index
    %121 = vector.load %arg5[%120, %c0_48] : memref<96x8xf32, #tpu.memory_space<vmem>>, vector<8x8xf32>
    %122 = arith.truncf %121 : vector<8x8xf32> to vector<8x8xbf16>
    %c16_i32_49 = arith.constant 16 : i32
    %123 = arith.addi %113, %c16_i32_49 : i32
    %124 = tpu.assume_multiple %123, 8 : i32
    %125 = arith.index_cast %124 : i32 to index
    %c0_50 = arith.constant 0 : index
    %126 = vector.load %arg5[%125, %c0_50] : memref<96x8xf32, #tpu.memory_space<vmem>>, vector<8x8xf32>
    %127 = arith.truncf %126 : vector<8x8xf32> to vector<8x8xbf16>
    %cst_51 = arith.constant dense<0.000000e+00> : vector<8x8xf32>
    %128 = tpu.matmul %117, %122, %cst_51 {dimension_numbers = #tpu.dot_dimension_numbers<[0], [0], [1], [1], [0, 1, 1, 1], [], []>} : vector<8x8xbf16>, vector<8x8xbf16>, vector<8x8xf32> -> vector<8x8xf32>
    %129 = vector.broadcast %cst_8 : f32 to vector<8x8xf32>
    %130 = arith.select %10, %128, %129 : vector<8x8xi1>, vector<8x8xf32>
    %cst_52 = arith.constant dense<0xFF800000> : vector<8xf32>
    %131 = vector.multi_reduction <maximumf>, %130, %cst_52 [1] : vector<8x8xf32> to vector<8xf32>
    %132 = vector.shape_cast %131 : vector<8xf32> to vector<8x1xf32>
    %133 = vector.broadcast %132 : vector<8x1xf32> to vector<8x8xf32>
    %134 = arith.subf %130, %133 : vector<8x8xf32>
    %135 = math.exp %134 : vector<8x8xf32>
    %cst_53 = arith.constant dense<0.000000e+00> : vector<8xf32>
    %136 = vector.multi_reduction <add>, %135, %cst_53 [1] : vector<8x8xf32> to vector<8xf32>
    %137 = vector.shape_cast %136 : vector<8xf32> to vector<8x1xf32>
    %138 = tpu.reciprocal %137 {approx = true} : vector<8x1xf32> -> vector<8x1xf32>
    %139 = vector.broadcast %138 : vector<8x1xf32> to vector<8x8xf32>
    %140 = arith.mulf %135, %139 : vector<8x8xf32>
    %141 = arith.truncf %140 : vector<8x8xf32> to vector<8x8xbf16>
    %cst_54 = arith.constant dense<0.000000e+00> : vector<8x8xf32>
    %142 = tpu.matmul %127, %141, %cst_54 {dimension_numbers = #tpu.dot_dimension_numbers<[1], [1], [0], [0], [0, 0, 1, 0], [], []>} : vector<8x8xbf16>, vector<8x8xbf16>, vector<8x8xf32> -> vector<8x8xf32>
    %c0_55 = arith.constant 0 : index
    %143 = arith.index_cast %c3_i32 : i32 to index
    %c0_56 = arith.constant 0 : index
    %c0_57 = arith.constant 0 : index
    %144 = vector.load %arg4[%c0_55, %143, %c0_56, %c0_57] : memref<1x4x8x8xf32, #tpu.memory_space<vmem>>, vector<1x1x8x8xf32>
    %145 = vector.shape_cast %144 : vector<1x1x8x8xf32> to vector<8x8xf32>
    %146 = vector.shape_cast %142 : vector<8x8xf32> to vector<1x1x8x8xf32>
    tpu.vector_store %arg4[%c0_55, %143, %c0_56, %c0_57], %146 {strides = array<i32>} : memref<1x4x8x8xf32, #tpu.memory_space<vmem>>, vector<1x1x8x8xf32>,
    %c4_i32 = arith.constant 4 : i32
    return
  }
  func.func @transform_0(%arg0: i32) -> (i32, i32, i32) {
    %c0_i32 = arith.constant 0 : i32
    %c0_i32_0 = arith.constant 0 : i32
    %c0_i32_1 = arith.constant 0 : i32
    return %arg0, %c0_i32, %c0_i32_0 : i32, i32, i32
  }
  func.func @transform_1(%arg0: i32) -> (i32, i32) {
    %c0_i32 = arith.constant 0 : i32
    %c0_i32_0 = arith.constant 0 : i32
    %c0_i32_1 = arith.constant 0 : i32
    return %c0_i32, %c0_i32_0 : i32, i32
  }
  func.func @transform_2(%arg0: i32) -> (i32, i32) {
    %c0_i32 = arith.constant 0 : i32
    %c0_i32_0 = arith.constant 0 : i32
    %c0_i32_1 = arith.constant 0 : i32
    return %c0_i32, %c0_i32_0 : i32, i32
  }
  func.func @transform_3(%arg0: i32) -> (i32, i32, i32, i32) {
    %c0_i32 = arith.constant 0 : i32
    %c0_i32_0 = arith.constant 0 : i32
    %c0_i32_1 = arith.constant 0 : i32
    %c0_i32_2 = arith.constant 0 : i32
    return %arg0, %c0_i32, %c0_i32_0, %c0_i32_1 : i32, i32, i32, i32
  }
}

</mosaic_0001>

<llo_original>
// kernel: tpu_custom_call.1
$region0: #{tpu_custom_call.1}
  #allocation0 [shape = 'u32[]', space=smem, size = 0x4, offset = 0x4, fixed_abs, tag = 'smem constant byte address 0x4 - core index']
  #allocation1 [shape = 'u32[144,128]{1,0:T(1,128)}', space=vmem, size = 0x12000, scoped, tag = 'internal scratch']
  #allocation2 [shape = 'f32[96,8]{1,0:T(8,128)}', space=vmem, size = 0xc000, scoped, tag = 'scratch operand']
  %s0 = inlined_call_operand.vmem [shape: bf16[2,8,32], index: 0, kind: input, shape index: {}]
  %s1 = inlined_call_operand.vmem [shape: bf16[96,32], index: 1, kind: input, shape index: {}]
  %s2 = inlined_call_operand.vmem [shape: f32[96,1], index: 2, kind: input, shape index: {}]
  %s3 = inlined_call_operand.hbm [shape: f32[2,4,8,8], index: 3, kind: output, shape index: {}]
  %s4 = sld [smem:[#allocation0]]
  $region45: #{tpu_custom_call.1} parent=0
    _
  %s6 = ssub.s32 1, %s4
  %s7 = scalar_select 0, %s6, %s4
  $region1: #{tpu_custom_call.1} parent=0
    #allocation3 [shape = 'u8[32768]{0}', space=vmem, size = 0x8000, scoped, tag = 'output window, operand 0']
    #allocation4 [shape = 's32[2]{0}', space=sflag, size = 0x8, scoped, tag = 'scoped memory for tpu_custom_call.1']
    %8 = vsyncpa [#allocation4], 0
    %s9 = scalar_lea.sflag [#allocation4], 1
    %10 = vsyncpa %s9, 0
    loop: start=0, step=1, limit=4
    $region2: #{tpu_custom_call.1} parent=1 // loop_pre_header
      _
    $region3: #{tpu_custom_call.1} parent=1 // loop_header
      %s12 = sphi 0, %s16
      %p13 = scmp.ge.s32.totalorder %s12, 4
      %s22 = sphi 0, %s24
      %s25 = sphi 0, %s22
      %s26 = sphi 0, %s25
      %s42 = sphi 0, %s26
      %s46 = sphi 0, %s46
      %s48 = sphi 0, %s46
      %s49 = sphi 0, %s48
      %s63 = sphi 0, %s49
      %s67 = sphi 0, %s67
      %s69 = sphi 0, %s67
      %s70 = sphi 0, %s69
      %s84 = sphi 0, %s70
      %s90 = sphi 0, %s92
      %s93 = sphi 0, %s90
      %s94 = sphi 0, %s93
      %s110 = sphi 0, %s94
    $region4: #{tpu_custom_call.1} parent=1 // loop_header_branch
      %15 = sbr.rel (%p13) target = $region8
    $region5: #{tpu_custom_call.1} parent=1 // loop_body
      %s17 = ssub.s32 %s12, 1
      %s18 = ssub.s32 %s12, 2
      %s19 = sadd.s32 %s12, 1
      %s20 = ssub.s32 %s12, %s19
      %p21 = scmp.eq.s32.totalorder %s20, 0
      %s23 = sadd.s32 %s22, 1
      %s24 = scalar_select %p21, %s22, %s23
      %p27 = pneg %p21
      %p28 = scmp.eq.s32.totalorder %s12, 1
      %p29 = por %p27, %p28
      %p30 = scmp.ne.s32.totalorder %s22, %s25
      %p31 = scmp.eq.s32.totalorder %s12, 0
      %p32 = por %p30, %p31
      %p33 = scmp.ne.s32.totalorder %s22, %s25
      %p34 = scmp.eq.s32.totalorder %s17, 1
      %p35 = por %p33, %p34
      %p36 = scmp.ne.s32.totalorder %s25, %s26
      %p37 = scmp.eq.s32.totalorder %s17, 0
      %p38 = por %p36, %p37
      %p39 = scmp.ne.s32.totalorder %s25, %s26
      %p40 = scmp.eq.s32.totalorder %s18, 1
      %p41 = por %p39, %p40
      %p43 = scmp.ne.s32.totalorder %s26, %s42
      %p44 = scmp.eq.s32.totalorder %s18, 0
      %p45 = por %p43, %p44
      %s47 = sadd.s32 %s46, 1
      %p50 = scmp.eq.s32.totalorder %s12, 1
      %p51 = scmp.ne.s32.totalorder %s46, %s48
      %p52 = scmp.eq.s32.totalorder %s12, 0
      %p53 = por %p51, %p52
      %p54 = scmp.ne.s32.totalorder %s46, %s48
      %p55 = scmp.eq.s32.totalorder %s17, 1
      %p56 = por %p54, %p55
      %p57 = scmp.ne.s32.totalorder %s48, %s49
      %p58 = scmp.eq.s32.totalorder %s17, 0
      %p59 = por %p57, %p58
      %p60 = scmp.ne.s32.totalorder %s48, %s49
      %p61 = scmp.eq.s32.totalorder %s18, 1
      %p62 = por %p60, %p61
      %p64 = scmp.ne.s32.totalorder %s49, %s63
      %p65 = scmp.eq.s32.totalorder %s18, 0
      %p66 = por %p64, %p65
      %s68 = sadd.s32 %s67, 1
      %p71 = scmp.eq.s32.totalorder %s12, 1
      %p72 = scmp.ne.s32.totalorder %s67, %s69
      %p73 = scmp.eq.s32.totalorder %s12, 0
      %p74 = por %p72, %p73
      %p75 = scmp.ne.s32.totalorder %s67, %s69
      %p76 = scmp.eq.s32.totalorder %s17, 1
      %p77 = por %p75, %p76
      %p78 = scmp.ne.s32.totalorder %s69, %s70
      %p79 = scmp.eq.s32.totalorder %s17, 0
      %p80 = por %p78, %p79
      %p81 = scmp.ne.s32.totalorder %s69, %s70
      %p82 = scmp.eq.s32.totalorder %s18, 1
      %p83 = por %p81, %p82
      %p85 = scmp.ne.s32.totalorder %s70, %s84
      %p86 = scmp.eq.s32.totalorder %s18, 0
      %p87 = por %p85, %p86
      %s88 = ssub.s32 %s12, %s19
      %p89 = scmp.eq.s32.totalorder %s88, 0
      %s91 = sadd.s32 %s90, 1
      %s92 = scalar_select %p89, %s90, %s91
      %p95 = pneg %p89
      %p96 = scmp.eq.s32.totalorder %s12, 1
      %p97 = por %p95, %p96
      %p98 = scmp.ne.s32.totalorder %s90, %s93
      %p99 = scmp.eq.s32.totalorder %s12, 0
      %p100 = por %p98, %p99
      %p101 = scmp.ne.s32.totalorder %s90, %s93
      %p102 = scmp.eq.s32.totalorder %s17, 1
      %p103 = por %p101, %p102
      %p104 = scmp.ne.s32.totalorder %s93, %s94
      %p105 = scmp.eq.s32.totalorder %s17, 0
      %p106 = por %p104, %p105
      %p107 = scmp.ne.s32.totalorder %s93, %s94
      %p108 = scmp.eq.s32.totalorder %s18, 1
      %p109 = por %p107, %p108
      %p111 = scmp.ne.s32.totalorder %s94, %s110
      %p112 = scmp.eq.s32.totalorder %s18, 0
      %p113 = por %p111, %p112
      %p114 = scmp.le.s32.totalorder 1, %s12
      %p115 = scmp.lt.s32.totalorder %s12, 3
      %p116 = pnand %p114, %p115
      %p117 = pneg %p116
      // Predicated region
      $region9: #{tpu_custom_call.1} parent=5 // pred_check
        _
      $region10: #{tpu_custom_call.1} parent=5 // pred_check_branch
        %119 = sbr.rel (%p116) target = $region12
      $region11: #{tpu_custom_call.1} parent=5 // pred_region
        %s120 = ssub.s32 %s12, 1
        // Predicated region
        $region13: #{tpu_custom_call.1} parent=11 // pred_check
          %p121 = pneg %p59
        $region14: #{tpu_custom_call.1} parent=11 // pred_check_branch
          %123 = sbr.rel (%p121) target = $region16
        $region15: #{tpu_custom_call.1} parent=11 // pred_region
          _
        $region16: #{tpu_custom_call.1} parent=11 // pred_fallthru
          _
        // Predicated region
        $region17: #{tpu_custom_call.1} parent=11 // pred_check
          %p124 = pneg %p80
        $region18: #{tpu_custom_call.1} parent=11 // pred_check_branch
          %126 = sbr.rel (%p124) target = $region20
        $region19: #{tpu_custom_call.1} parent=11 // pred_region
          _
        $region20: #{tpu_custom_call.1} parent=11 // pred_fallthru
          _
      $region12: #{tpu_custom_call.1} parent=5 // pred_fallthru
        _
      %p127 = scmp.lt.s32.totalorder %s12, 2
      // Predicated region
      $region21: #{tpu_custom_call.1} parent=5 // pred_check
        %p128 = pneg %p127
      $region22: #{tpu_custom_call.1} parent=5 // pred_check_branch
        %130 = sbr.rel (%p128) target = $region24
      $region23: #{tpu_custom_call.1} parent=5 // pred_region
        // Predicated region
        $region25: #{tpu_custom_call.1} parent=23 // pred_check
          %p131 = pneg %p32
        $region26: #{tpu_custom_call.1} parent=23 // pred_check_branch
          %133 = sbr.rel (%p131) target = $region28
        $region27: #{tpu_custom_call.1} parent=23 // pred_region
          %p134 = scmp.lt.s32.totalorder %s12, 1
          %s135 = scalar_select %p134, %s12, 1
          %s136 = smul.addr %s135, 4
          %s137 = scalar_lea.vmem %s0, %s136
        $region28: #{tpu_custom_call.1} parent=23 // pred_fallthru
          _
      $region24: #{tpu_custom_call.1} parent=5 // pred_fallthru
        _
      %p138 = scmp.le.s32.totalorder 1, %s12
      %p139 = scmp.lt.s32.totalorder %s12, 3
      %p140 = pnand %p138, %p139
      %p141 = pneg %p140
      // Predicated region
      $region29: #{tpu_custom_call.1} parent=5 // pred_check
        _
      $region30: #{tpu_custom_call.1} parent=5 // pred_check_branch
        %143 = sbr.rel (%p140) target = $region32
      $region31: #{tpu_custom_call.1} parent=5 // pred_region
        %s144 = ssub.s32 %s12, 1
        %p145 = scmp.lt.s32.totalorder %s17, 1
        %s146 = scalar_select %p145, %s17, 1
        %s147 = smul.addr %s146, 4
        %s148 = scalar_lea.vmem %s0, %s147
        %p149 = pneg %p38
        %p150 = pneg %p35
        %p151 = pneg %p59
        %p152 = pneg %p56
        %p153 = pneg %p80
        %p154 = pneg %p77
        %p155 = pneg %p106
        %p156 = pneg %p103
        %s157 = sand.u32 %s93, 1
        %s158 = scalar_lea.sflag [#allocation4], %s157
        %s159 = sand.u32 %s93, 1
        %s160 = smul.addr %s159, 32
        %s161 = scalar_lea.vmem [#allocation3], %s160
        %p162 = scmp.lt.s32.totalorder %s17, 1
        %s163 = scalar_select %p162, %s17, 1
        %s164 = smul.addr %s163, 4
        %s165 = scalar_lea.vmem %s0, %s164
        %v167 = vld [vmem:[%s165] sm:$0xf]
        %v168 = vld [vmem:[%s1] sm:$0xf]
        %v169 = vld [vmem:[%s1 + $0x4] sm:$0xf]
        %v170 = vld [vmem:[%s1 + $0x8] sm:$0xf]
        %v171 = vld [vmem:[%s1 + $0xc] sm:$0xf]
        %v172 = vld [vmem:[%s1 + $0x10] sm:$0xf]
        %v173 = vld [vmem:[%s1 + $0x14] sm:$0xf]
        %v174 = vld [vmem:[%s1 + $0x18] sm:$0xf]
        %v175 = vld [vmem:[%s1 + $0x1c] sm:$0xf]
        %v176 = vld [vmem:[%s1 + $0x20] sm:$0xf]
        %v177 = vld [vmem:[%s1 + $0x24] sm:$0xf]
        %v178 = vld [vmem:[%s1 + $0x28] sm:$0xf]
        %v179 = vld [vmem:[%s1 + $0x2c] sm:$0xf]
        %v180 = vld [vmem:[%s2] sm:$0xff]
        %v181 = vld [vmem:[%s2 + $0x8] sm:$0xff]
        %v182 = vld [vmem:[%s2 + $0x10] sm:$0xff]
        %v183 = vld [vmem:[%s2 + $0x18] sm:$0xff]
        %v184 = vld [vmem:[%s2 + $0x20] sm:$0xff]
        %v185 = vld [vmem:[%s2 + $0x28] sm:$0xff]
        %v186 = vld [vmem:[%s2 + $0x30] sm:$0xff]
        %v187 = vld [vmem:[%s2 + $0x38] sm:$0xff]
        %v188 = vld [vmem:[%s2 + $0x40] sm:$0xff]
        %v189 = vld [vmem:[%s2 + $0x48] sm:$0xff]
        %v190 = vld [vmem:[%s2 + $0x50] sm:$0xff]
        %v191 = vld [vmem:[%s2 + $0x58] sm:$0xff]
        %193 = vset.pattern.permute.xlu0 0
        %194 = vperm.xlu0 %193, %v180
        %v195 = vpop.permute.xlu0 %194
        %198 = vset.pattern.permute.xlu0 0
        %199 = vperm.xlu0 %198, %v181
        %v200 = vpop.permute.xlu0 %199
        %203 = vset.pattern.permute.xlu0 0
        %204 = vperm.xlu0 %203, %v182
        %v205 = vpop.permute.xlu0 %204
        %208 = vset.pattern.permute.xlu0 0
        %209 = vperm.xlu0 %208, %v183
        %v210 = vpop.permute.xlu0 %209
        %213 = vset.pattern.permute.xlu0 0
        %214 = vperm.xlu0 %213, %v184
        %v215 = vpop.permute.xlu0 %214
        %218 = vset.pattern.permute.xlu0 0
        %219 = vperm.xlu0 %218, %v185
        %v220 = vpop.permute.xlu0 %219
        %223 = vset.pattern.permute.xlu0 0
        %224 = vperm.xlu0 %223, %v186
        %v225 = vpop.permute.xlu0 %224
        %228 = vset.pattern.permute.xlu0 0
        %229 = vperm.xlu0 %228, %v187
        %v230 = vpop.permute.xlu0 %229
        %233 = vset.pattern.permute.xlu0 0
        %234 = vperm.xlu0 %233, %v188
        %v235 = vpop.permute.xlu0 %234
        %238 = vset.pattern.permute.xlu0 0
        %239 = vperm.xlu0 %238, %v189
        %v240 = vpop.permute.xlu0 %239
        %243 = vset.pattern.permute.xlu0 0
        %244 = vperm.xlu0 %243, %v190
        %v245 = vpop.permute.xlu0 %244
        %248 = vset.pattern.permute.xlu0 0
        %249 = vperm.xlu0 %248, %v191
        %v250 = vpop.permute.xlu0 %249
        %v264 = vunpack.c.l.b16 %v168
        %v265 = vunpack.c.l.b16 %v169
        %v266 = vunpack.c.l.b16 %v170
        %v267 = vunpack.c.l.b16 %v171
        %v268 = vunpack.c.l.b16 %v172
        %v269 = vunpack.c.l.b16 %v173
        %v270 = vunpack.c.l.b16 %v174
        %v271 = vunpack.c.l.b16 %v175
        %v272 = vunpack.c.l.b16 %v176
        %v273 = vunpack.c.l.b16 %v177
        %v274 = vunpack.c.l.b16 %v178
        %v275 = vunpack.c.l.b16 %v179
        %v276 = vpack.c.b16 %v265, %v264
        %v277 = vpack.c.b16 %v267, %v266
        %v278 = vpack.c.b16 %v269, %v268
        %v279 = vpack.c.b16 %v271, %v270
        %v280 = vpack.c.b16 %v273, %v272
        %v281 = vpack.c.b16 %v275, %v274
        %vm282 = vcmask 261120
        %v284 = vsel %vm282, %v276, 0
        %v287 = vsel %vm282, %v277, 0
        %v290 = vsel %vm282, %v278, 0
        %v293 = vsel %vm282, %v279, 0
        %v296 = vsel %vm282, %v280, 0
        %v299 = vsel %vm282, %v281, 0
        %v302 = vsel %vm282, %v167, 0
        %304 = vmatprep.subr.bf16.mxu0 0
        %305 = vmatpush1.bf16.xpose.msra.mxu0 %v302
        %306 = vmatprep.subr.bf16.mxu0 0
        %307 = vmatpush1.bf16.xpose.msra.mxu0 0
        %308 = vmatprep.subr.bf16.mxu0 0
        %309 = vmatpush1.bf16.xpose.msra.mxu0 0
        %310 = vmatprep.subr.bf16.mxu0 0
        %311 = vmatpush1.bf16.xpose.msra.mxu0 0
        %312 = vmatprep.subr.bf16.mxu0 0
        %313 = vmatpush1.bf16.xpose.msra.mxu0 0
        %314 = vmatprep.subr.bf16.mxu0 0
        %315 = vmatpush1.bf16.xpose.msra.mxu0 0
        %316 = vmatprep.subr.bf16.mxu0 0
        %317 = vmatpush1.bf16.xpose.msra.mxu0 0
        %318 = vmatprep.subr.bf16.mxu0 0
        %319 = vmatpush1.bf16.xpose.msra.mxu0 0
        %320 = vmatprep.subr.bf16.mxu0 0
        %321 = vmatpush1.bf16.xpose.msra.mxu0 0
        %322 = vmatprep.subr.bf16.mxu0 0
        %323 = vmatpush1.bf16.xpose.msra.mxu0 0
        %324 = vmatprep.subr.bf16.mxu0 0
        %325 = vmatpush1.bf16.xpose.msra.mxu0 0
        %326 = vmatprep.subr.bf16.mxu0 0
        %327 = vmatpush1.bf16.xpose.msra.mxu0 0
        %328 = vmatprep.subr.bf16.mxu0 0
        %329 = vmatpush1.bf16.xpose.msra.mxu0 0
        %330 = vmatprep.subr.bf16.mxu0 0
        %331 = vmatpush1.bf16.xpose.msra.mxu0 0
        %332 = vmatprep.subr.bf16.mxu0 0
        %333 = vmatpush1.bf16.xpose.msra.mxu0 0
        %334 = vmatprep.subr.bf16.mxu0 0
        %335 = vmatpush1.bf16.xpose.msra.mxu0 0
        %336 = vmatprep.mubr.bf16.mxu0 0
        %337 = vmatmul.mubr.bf16.gmra.mrb[0].mxu0 %v284
        %v338 = vpop.f32.mrb[0].mxu0
        %v339 = vadd.f32 %v195, %v338
        %v340 = vpop.f32.mrb[0].mxu0
        %v341 = vpop.f32.mrb[0].mxu0
        %v342 = vadd.f32 %v200, %v341
        %v343 = vpop.f32.mrb[0].mxu0
        %344 = vmatprep.mubr.bf16.mxu0 0
        %345 = vmatmul.mubr.bf16.gmra.mrb[0].mxu0 %v287
        %v346 = vpop.f32.mrb[0].mxu0
        %v347 = vadd.f32 %v205, %v346
        %v348 = vpop.f32.mrb[0].mxu0
        %v349 = vpop.f32.mrb[0].mxu0
        %v350 = vadd.f32 %v210, %v349
        %v351 = vpop.f32.mrb[0].mxu0
        %352 = vmatprep.mubr.bf16.mxu0 0
        %353 = vmatmul.mubr.bf16.gmra.mrb[0].mxu0 %v290
        %v354 = vpop.f32.mrb[0].mxu0
        %v355 = vadd.f32 %v215, %v354
        %v356 = vpop.f32.mrb[0].mxu0
        %v357 = vpop.f32.mrb[0].mxu0
        %v358 = vadd.f32 %v220, %v357
        %v359 = vpop.f32.mrb[0].mxu0
        %360 = vmatprep.mubr.bf16.mxu0 0
        %361 = vmatmul.mubr.bf16.gmra.mrb[0].mxu0 %v293
        %v362 = vpop.f32.mrb[0].mxu0
        %v363 = vadd.f32 %v225, %v362
        %v364 = vpop.f32.mrb[0].mxu0
        %v365 = vpop.f32.mrb[0].mxu0
        %v366 = vadd.f32 %v230, %v365
        %v367 = vpop.f32.mrb[0].mxu0
        %368 = vmatprep.mubr.bf16.mxu0 0
        %369 = vmatmul.mubr.bf16.gmra.mrb[0].mxu0 %v296
        %v370 = vpop.f32.mrb[0].mxu0
        %v371 = vadd.f32 %v235, %v370
        %v372 = vpop.f32.mrb[0].mxu0
        %v373 = vpop.f32.mrb[0].mxu0
        %v374 = vadd.f32 %v240, %v373
        %v375 = vpop.f32.mrb[0].mxu0
        %376 = vmatprep.mubr.bf16.mxu0 0
        %377 = vmatmul.mubr.bf16.gmra.mrb[0].mxu0 %v299
        %v378 = vpop.f32.mrb[0].mxu0
        %v379 = vadd.f32 %v245, %v378
        %v380 = vpop.f32.mrb[0].mxu0
        %v381 = vpop.f32.mrb[0].mxu0
        %v382 = vadd.f32 %v250, %v381
        %v383 = vpop.f32.mrb[0].mxu0
        %384 = vdwg.mxu0
        %vm385 = vcmask 64512
        %386 = vst.msk [vmem:[#allocation2] sm:$0xff] %vm385, %v339
        %387 = vst.msk [vmem:[#allocation2 + $0x8] sm:$0xff] %vm385, %v342
        %388 = vst.msk [vmem:[#allocation2 + $0x10] sm:$0xff] %vm385, %v347
        %389 = vst.msk [vmem:[#allocation2 + $0x18] sm:$0xff] %vm385, %v350
        %390 = vst.msk [vmem:[#allocation2 + $0x20] sm:$0xff] %vm385, %v355
        %391 = vst.msk [vmem:[#allocation2 + $0x28] sm:$0xff] %vm385, %v358
        %392 = vst.msk [vmem:[#allocation2 + $0x30] sm:$0xff] %vm385, %v363
        %393 = vst.msk [vmem:[#allocation2 + $0x38] sm:$0xff] %vm385, %v366
        %394 = vst.msk [vmem:[#allocation2 + $0x40] sm:$0xff] %vm385, %v371
        %395 = vst.msk [vmem:[#allocation2 + $0x48] sm:$0xff] %vm385, %v374
        %396 = vst.msk [vmem:[#allocation2 + $0x50] sm:$0xff] %vm385, %v379
        %397 = vst.msk [vmem:[#allocation2 + $0x58] sm:$0xff] %vm385, %v382
        %v398 = vlaneseq
        %v399 = vshrl.u32 %v398, 7
        %v400 = vlaneseq
        %v401 = vand.u32 %v400, 127
        %vm402 = vcmp.le.s32.totalorder %v401, %v399
        %v403 = vld [vmem:[#allocation2] sm:$0xff]
        %v404 = vpack.c.bf16 %v403, %v403
        %s405 = scalar_lea.vmem [#allocation2], 8
        %v406 = vld [vmem:[%s405] sm:$0xff]
        %v407 = vpack.c.bf16 %v406, %v406
        %s408 = scalar_lea.vmem [#allocation2], 16
        %v409 = vld [vmem:[%s408] sm:$0xff]
        %v410 = vpack.c.bf16 %v409, %v409
        %411 = vxpose.xlu0.c.b16.start [1/8] %v404, 128
        %412 = vxpose.xlu0.c.b16.cont [2/8] 0, 128
        %413 = vxpose.xlu0.c.b16.cont [3/8] 0, 128
        %414 = vxpose.xlu0.c.b16.cont [4/8] 0, 128
        %415 = vxpose.xlu0.c.b16.cont [5/8] 0, 128
        %416 = vxpose.xlu0.c.b16.cont [6/8] 0, 128
        %417 = vxpose.xlu0.c.b16.cont [7/8] 0, 128
        %418 = vxpose.xlu0.c.b16.end [8/8] 0, 128
        %v419 = vpop.trf.xlu0
        %v420 = vpop.trf.xlu0
        %v421 = vpop.trf.xlu0
        %v422 = vpop.trf.xlu0
        %v423 = vpop.trf.xlu0
        %v424 = vpop.trf.xlu0
        %v425 = vpop.trf.xlu0
        %v426 = vpop.trf.xlu0
        %v428 = vsel %vm385, %v419, 0
        %vm430 = vcmask 1043456
        %v432 = vsel %vm430, %v407, 0
        %434 = vmatprep.subr.bf16.mxu0 0
        %435 = vmatpush1.bf16.msra.mxu0 %v432
        %436 = vmatprep.subr.bf16.mxu0 0
        %437 = vmatpush1.bf16.msra.mxu0 0
        %438 = vmatprep.subr.bf16.mxu0 0
        %439 = vmatpush1.bf16.msra.mxu0 0
        %440 = vmatprep.subr.bf16.mxu0 0
        %441 = vmatpush1.bf16.msra.mxu0 0
        %442 = vmatprep.subr.bf16.mxu0 0
        %443 = vmatpush1.bf16.msra.mxu0 0
        %444 = vmatprep.subr.bf16.mxu0 0
        %445 = vmatpush1.bf16.msra.mxu0 0
        %446 = vmatprep.subr.bf16.mxu0 0
        %447 = vmatpush1.bf16.msra.mxu0 0
        %448 = vmatprep.subr.bf16.mxu0 0
        %449 = vmatpush1.bf16.msra.mxu0 0
        %450 = vmatprep.subr.bf16.mxu0 0
        %451 = vmatpush1.bf16.msra.mxu0 0
        %452 = vmatprep.subr.bf16.mxu0 0
        %453 = vmatpush1.bf16.msra.mxu0 0
        %454 = vmatprep.subr.bf16.mxu0 0
        %455 = vmatpush1.bf16.msra.mxu0 0
        %456 = vmatprep.subr.bf16.mxu0 0
        %457 = vmatpush1.bf16.msra.mxu0 0
        %458 = vmatprep.subr.bf16.mxu0 0
        %459 = vmatpush1.bf16.msra.mxu0 0
        %460 = vmatprep.subr.bf16.mxu0 0
        %461 = vmatpush1.bf16.msra.mxu0 0
        %462 = vmatprep.subr.bf16.mxu0 0
        %463 = vmatpush1.bf16.msra.mxu0 0
        %464 = vmatprep.subr.bf16.mxu0 0
        %465 = vmatpush1.bf16.msra.mxu0 0
        %466 = vmatprep.mubr.bf16.mxu0 0
        %467 = vmatmul.mubr.bf16.gmra.mrb[0].mxu0 %v428
        %v468 = vpop.f32.mrb[0].mxu0
        %v469 = vadd.f32 0.0, %v468
        %v470 = vpop.f32.mrb[0].mxu0
        %v471 = vpop.f32.mrb[0].mxu0
        %v472 = vpop.f32.mrb[0].mxu0
        %473 = vdwg.mxu0
        %v474 = vsel %vm402, %v469, -1e+30
        %v475 = vsel %vm385, %v474, -inf
        %476 = vmax.xlane.f32.xlu0 %v475
        %v477 = vpop.xlane.xlu0 %476
        %v478 = vsub.f32 %v474, %v477
        %v479 = vmul.f32 %v478, 1.442695
        %v480 = vpow.pop %v479
        %v481 = vsel %vm385, %v480, 0.0
        %482 = vadd.xlane.f32.xlu0 %v481
        %v483 = vpop.xlane.xlu0 %482
        %v484 = vrcp.pop %v483
        %v485 = vmul.f32 %v480, %v484
        %v486 = vpack.c.bf16 %v485, %v485
        %v488 = vsel %vm385, %v410, 0
        %v491 = vsel %vm385, %v486, 0
        %493 = vmatprep.subr.bf16.mxu0 0
        %494 = vmatpush1.bf16.xpose.msra.mxu0 %v491
        %495 = vmatprep.subr.bf16.mxu0 0
        %496 = vmatpush1.bf16.xpose.msra.mxu0 0
        %497 = vmatprep.subr.bf16.mxu0 0
        %498 = vmatpush1.bf16.xpose.msra.mxu0 0
        %499 = vmatprep.subr.bf16.mxu0 0
        %500 = vmatpush1.bf16.xpose.msra.mxu0 0
        %501 = vmatprep.subr.bf16.mxu0 0
        %502 = vmatpush1.bf16.xpose.msra.mxu0 0
        %503 = vmatprep.subr.bf16.mxu0 0
        %504 = vmatpush1.bf16.xpose.msra.mxu0 0
        %505 = vmatprep.subr.bf16.mxu0 0
        %506 = vmatpush1.bf16.xpose.msra.mxu0 0
        %507 = vmatprep.subr.bf16.mxu0 0
        %508 = vmatpush1.bf16.xpose.msra.mxu0 0
        %509 = vmatprep.subr.bf16.mxu0 0
        %510 = vmatpush1.bf16.xpose.msra.mxu0 0
        %511 = vmatprep.subr.bf16.mxu0 0
        %512 = vmatpush1.bf16.xpose.msra.mxu0 0
        %513 = vmatprep.subr.bf16.mxu0 0
        %514 = vmatpush1.bf16.xpose.msra.mxu0 0
        %515 = vmatprep.subr.bf16.mxu0 0
        %516 = vmatpush1.bf16.xpose.msra.mxu0 0
        %517 = vmatprep.subr.bf16.mxu0 0
        %518 = vmatpush1.bf16.xpose.msra.mxu0 0
        %519 = vmatprep.subr.bf16.mxu0 0
        %520 = vmatpush1.bf16.xpose.msra.mxu0 0
        %521 = vmatprep.subr.bf16.mxu0 0
        %522 = vmatpush1.bf16.xpose.msra.mxu0 0
        %523 = vmatprep.subr.bf16.mxu0 0
        %524 = vmatpush1.bf16.xpose.msra.mxu0 0
        %525 = vmatprep.mubr.bf16.mxu0 0
        %526 = vmatmul.mubr.bf16.gmra.mrb[0].mxu0 %v488
        %v527 = vpop.f32.mrb[0].mxu0
        %v528 = vadd.f32 0.0, %v527
        %v529 = vpop.f32.mrb[0].mxu0
        %v530 = vpop.f32.mrb[0].mxu0
        %v531 = vpop.f32.mrb[0].mxu0
        %532 = vdwg.mxu0
        %533 = vst.msk [vmem:[%s161] sm:$0xff] %vm385, %v528
        %s534 = scalar_lea.vmem [#allocation2], 24
        %v535 = vld [vmem:[%s534] sm:$0xff]
        %v536 = vpack.c.bf16 %v535, %v535
        %s537 = scalar_lea.vmem [#allocation2], 32
        %v538 = vld [vmem:[%s537] sm:$0xff]
        %v539 = vpack.c.bf16 %v538, %v538
        %s540 = scalar_lea.vmem [#allocation2], 40
        %v541 = vld [vmem:[%s540] sm:$0xff]
        %v542 = vpack.c.bf16 %v541, %v541
        %543 = vxpose.xlu0.c.b16.start [1/8] %v536, 128
        %544 = vxpose.xlu0.c.b16.cont [2/8] 0, 128
        %545 = vxpose.xlu0.c.b16.cont [3/8] 0, 128
        %546 = vxpose.xlu0.c.b16.cont [4/8] 0, 128
        %547 = vxpose.xlu0.c.b16.cont [5/8] 0, 128
        %548 = vxpose.xlu0.c.b16.cont [6/8] 0, 128
        %549 = vxpose.xlu0.c.b16.cont [7/8] 0, 128
        %550 = vxpose.xlu0.c.b16.end [8/8] 0, 128
        %v551 = vpop.trf.xlu0
        %v552 = vpop.trf.xlu0
        %v553 = vpop.trf.xlu0
        %v554 = vpop.trf.xlu0
        %v555 = vpop.trf.xlu0
        %v556 = vpop.trf.xlu0
        %v557 = vpop.trf.xlu0
        %v558 = vpop.trf.xlu0
        %v560 = vsel %vm385, %v551, 0
        %v563 = vsel %vm430, %v539, 0
        %565 = vmatprep.subr.bf16.mxu0 0
        %566 = vmatpush1.bf16.msra.mxu0 %v563
        %567 = vmatprep.subr.bf16.mxu0 0
        %568 = vmatpush1.bf16.msra.mxu0 0
        %569 = vmatprep.subr.bf16.mxu0 0
        %570 = vmatpush1.bf16.msra.mxu0 0
        %571 = vmatprep.subr.bf16.mxu0 0
        %572 = vmatpush1.bf16.msra.mxu0 0
        %573 = vmatprep.subr.bf16.mxu0 0
        %574 = vmatpush1.bf16.msra.mxu0 0
        %575 = vmatprep.subr.bf16.mxu0 0
        %576 = vmatpush1.bf16.msra.mxu0 0
        %577 = vmatprep.subr.bf16.mxu0 0
        %578 = vmatpush1.bf16.msra.mxu0 0
        %579 = vmatprep.subr.bf16.mxu0 0
        %580 = vmatpush1.bf16.msra.mxu0 0
        %581 = vmatprep.subr.bf16.mxu0 0
        %582 = vmatpush1.bf16.msra.mxu0 0
        %583 = vmatprep.subr.bf16.mxu0 0
        %584 = vmatpush1.bf16.msra.mxu0 0
        %585 = vmatprep.subr.bf16.mxu0 0
        %586 = vmatpush1.bf16.msra.mxu0 0
        %587 = vmatprep.subr.bf16.mxu0 0
        %588 = vmatpush1.bf16.msra.mxu0 0
        %589 = vmatprep.subr.bf16.mxu0 0
        %590 = vmatpush1.bf16.msra.mxu0 0
        %591 = vmatprep.subr.bf16.mxu0 0
        %592 = vmatpush1.bf16.msra.mxu0 0
        %593 = vmatprep.subr.bf16.mxu0 0
        %594 = vmatpush1.bf16.msra.mxu0 0
        %595 = vmatprep.subr.bf16.mxu0 0
        %596 = vmatpush1.bf16.msra.mxu0 0
        %597 = vmatprep.mubr.bf16.mxu0 0
        %598 = vmatmul.mubr.bf16.gmra.mrb[0].mxu0 %v560
        %v599 = vpop.f32.mrb[0].mxu0
        %v600 = vadd.f32 0.0, %v599
        %v601 = vpop.f32.mrb[0].mxu0
        %v602 = vpop.f32.mrb[0].mxu0
        %v603 = vpop.f32.mrb[0].mxu0
        %604 = vdwg.mxu0
        %v605 = vsel %vm402, %v600, -1e+30
        %v606 = vsel %vm385, %v605, -inf
        %607 = vmax.xlane.f32.xlu0 %v606
        %v608 = vpop.xlane.xlu0 %607
        %v609 = vsub.f32 %v605, %v608
        %v610 = vmul.f32 %v609, 1.442695
        %v611 = vpow.pop %v610
        %v612 = vsel %vm385, %v611, 0.0
        %613 = vadd.xlane.f32.xlu0 %v612
        %v614 = vpop.xlane.xlu0 %613
        %v615 = vrcp.pop %v614
        %v616 = vmul.f32 %v611, %v615
        %v617 = vpack.c.bf16 %v616, %v616
        %v619 = vsel %vm385, %v542, 0
        %v622 = vsel %vm385, %v617, 0
        %624 = vmatprep.subr.bf16.mxu0 0
        %625 = vmatpush1.bf16.xpose.msra.mxu0 %v622
        %626 = vmatprep.subr.bf16.mxu0 0
        %627 = vmatpush1.bf16.xpose.msra.mxu0 0
        %628 = vmatprep.subr.bf16.mxu0 0
        %629 = vmatpush1.bf16.xpose.msra.mxu0 0
        %630 = vmatprep.subr.bf16.mxu0 0
        %631 = vmatpush1.bf16.xpose.msra.mxu0 0
        %632 = vmatprep.subr.bf16.mxu0 0
        %633 = vmatpush1.bf16.xpose.msra.mxu0 0
        %634 = vmatprep.subr.bf16.mxu0 0
        %635 = vmatpush1.bf16.xpose.msra.mxu0 0
        %636 = vmatprep.subr.bf16.mxu0 0
        %637 = vmatpush1.bf16.xpose.msra.mxu0 0
        %638 = vmatprep.subr.bf16.mxu0 0
        %639 = vmatpush1.bf16.xpose.msra.mxu0 0
        %640 = vmatprep.subr.bf16.mxu0 0
        %641 = vmatpush1.bf16.xpose.msra.mxu0 0
        %642 = vmatprep.subr.bf16.mxu0 0
        %643 = vmatpush1.bf16.xpose.msra.mxu0 0
        %644 = vmatprep.subr.bf16.mxu0 0
        %645 = vmatpush1.bf16.xpose.msra.mxu0 0
        %646 = vmatprep.subr.bf16.mxu0 0
        %647 = vmatpush1.bf16.xpose.msra.mxu0 0
        %648 = vmatprep.subr.bf16.mxu0 0
        %649 = vmatpush1.bf16.xpose.msra.mxu0 0
        %650 = vmatprep.subr.bf16.mxu0 0
        %651 = vmatpush1.bf16.xpose.msra.mxu0 0
        %652 = vmatprep.subr.bf16.mxu0 0
        %653 = vmatpush1.bf16.xpose.msra.mxu0 0
        %654 = vmatprep.subr.bf16.mxu0 0
        %655 = vmatpush1.bf16.xpose.msra.mxu0 0
        %656 = vmatprep.mubr.bf16.mxu0 0
        %657 = vmatmul.mubr.bf16.gmra.mrb[0].mxu0 %v619
        %v658 = vpop.f32.mrb[0].mxu0
        %v659 = vadd.f32 0.0, %v658
        %v660 = vpop.f32.mrb[0].mxu0
        %v661 = vpop.f32.mrb[0].mxu0
        %v662 = vpop.f32.mrb[0].mxu0
        %663 = vdwg.mxu0
        %s664 = scalar_lea.vmem %s161, 8 [#allocation3]
        %665 = vst.msk [vmem:[%s664] sm:$0xff] %vm385, %v659
        %s666 = scalar_lea.vmem [#allocation2], 48
        %v667 = vld [vmem:[%s666] sm:$0xff]
        %v668 = vpack.c.bf16 %v667, %v667
        %s669 = scalar_lea.vmem [#allocation2], 56
        %v670 = vld [vmem:[%s669] sm:$0xff]
        %v671 = vpack.c.bf16 %v670, %v670
        %s672 = scalar_lea.vmem [#allocation2], 64
        %v673 = vld [vmem:[%s672] sm:$0xff]
        %v674 = vpack.c.bf16 %v673, %v673
        %675 = vxpose.xlu0.c.b16.start [1/8] %v668, 128
        %676 = vxpose.xlu0.c.b16.cont [2/8] 0, 128
        %677 = vxpose.xlu0.c.b16.cont [3/8] 0, 128
        %678 = vxpose.xlu0.c.b16.cont [4/8] 0, 128
        %679 = vxpose.xlu0.c.b16.cont [5/8] 0, 128
        %680 = vxpose.xlu0.c.b16.cont [6/8] 0, 128
        %681 = vxpose.xlu0.c.b16.cont [7/8] 0, 128
        %682 = vxpose.xlu0.c.b16.end [8/8] 0, 128
        %v683 = vpop.trf.xlu0
        %v684 = vpop.trf.xlu0
        %v685 = vpop.trf.xlu0
        %v686 = vpop.trf.xlu0
        %v687 = vpop.trf.xlu0
        %v688 = vpop.trf.xlu0
        %v689 = vpop.trf.xlu0
        %v690 = vpop.trf.xlu0
        %v692 = vsel %vm385, %v683, 0
        %v695 = vsel %vm430, %v671, 0
        %697 = vmatprep.subr.bf16.mxu0 0
        %698 = vmatpush1.bf16.msra.mxu0 %v695
        %699 = vmatprep.subr.bf16.mxu0 0
        %700 = vmatpush1.bf16.msra.mxu0 0
        %701 = vmatprep.subr.bf16.mxu0 0
        %702 = vmatpush1.bf16.msra.mxu0 0
        %703 = vmatprep.subr.bf16.mxu0 0
        %704 = vmatpush1.bf16.msra.mxu0 0
        %705 = vmatprep.subr.bf16.mxu0 0
        %706 = vmatpush1.bf16.msra.mxu0 0
        %707 = vmatprep.subr.bf16.mxu0 0
        %708 = vmatpush1.bf16.msra.mxu0 0
        %709 = vmatprep.subr.bf16.mxu0 0
        %710 = vmatpush1.bf16.msra.mxu0 0
        %711 = vmatprep.subr.bf16.mxu0 0
        %712 = vmatpush1.bf16.msra.mxu0 0
        %713 = vmatprep.subr.bf16.mxu0 0
        %714 = vmatpush1.bf16.msra.mxu0 0
        %715 = vmatprep.subr.bf16.mxu0 0
        %716 = vmatpush1.bf16.msra.mxu0 0
        %717 = vmatprep.subr.bf16.mxu0 0
        %718 = vmatpush1.bf16.msra.mxu0 0
        %719 = vmatprep.subr.bf16.mxu0 0
        %720 = vmatpush1.bf16.msra.mxu0 0
        %721 = vmatprep.subr.bf16.mxu0 0
        %722 = vmatpush1.bf16.msra.mxu0 0
        %723 = vmatprep.subr.bf16.mxu0 0
        %724 = vmatpush1.bf16.msra.mxu0 0
        %725 = vmatprep.subr.bf16.mxu0 0
        %726 = vmatpush1.bf16.msra.mxu0 0
        %727 = vmatprep.subr.bf16.mxu0 0
        %728 = vmatpush1.bf16.msra.mxu0 0
        %729 = vmatprep.mubr.bf16.mxu0 0
        %730 = vmatmul.mubr.bf16.gmra.mrb[0].mxu0 %v692
        %v731 = vpop.f32.mrb[0].mxu0
        %v732 = vadd.f32 0.0, %v731
        %v733 = vpop.f32.mrb[0].mxu0
        %v734 = vpop.f32.mrb[0].mxu0
        %v735 = vpop.f32.mrb[0].mxu0
        %736 = vdwg.mxu0
        %v737 = vsel %vm402, %v732, -1e+30
        %v738 = vsel %vm385, %v737, -inf
        %739 = vmax.xlane.f32.xlu0 %v738
        %v740 = vpop.xlane.xlu0 %739
        %v741 = vsub.f32 %v737, %v740
        %v742 = vmul.f32 %v741, 1.442695
        %v743 = vpow.pop %v742
        %v744 = vsel %vm385, %v743, 0.0
        %745 = vadd.xlane.f32.xlu0 %v744
        %v746 = vpop.xlane.xlu0 %745
        %v747 = vrcp.pop %v746
        %v748 = vmul.f32 %v743, %v747
        %v749 = vpack.c.bf16 %v748, %v748
        %v751 = vsel %vm385, %v674, 0
        %v754 = vsel %vm385, %v749, 0
        %756 = vmatprep.subr.bf16.mxu0 0
        %757 = vmatpush1.bf16.xpose.msra.mxu0 %v754
        %758 = vmatprep.subr.bf16.mxu0 0
        %759 = vmatpush1.bf16.xpose.msra.mxu0 0
        %760 = vmatprep.subr.bf16.mxu0 0
        %761 = vmatpush1.bf16.xpose.msra.mxu0 0
        %762 = vmatprep.subr.bf16.mxu0 0
        %763 = vmatpush1.bf16.xpose.msra.mxu0 0
        %764 = vmatprep.subr.bf16.mxu0 0
        %765 = vmatpush1.bf16.xpose.msra.mxu0 0
        %766 = vmatprep.subr.bf16.mxu0 0
        %767 = vmatpush1.bf16.xpose.msra.mxu0 0
        %768 = vmatprep.subr.bf16.mxu0 0
        %769 = vmatpush1.bf16.xpose.msra.mxu0 0
        %770 = vmatprep.subr.bf16.mxu0 0
        %771 = vmatpush1.bf16.xpose.msra.mxu0 0
        %772 = vmatprep.subr.bf16.mxu0 0
        %773 = vmatpush1.bf16.xpose.msra.mxu0 0
        %774 = vmatprep.subr.bf16.mxu0 0
        %775 = vmatpush1.bf16.xpose.msra.mxu0 0
        %776 = vmatprep.subr.bf16.mxu0 0
        %777 = vmatpush1.bf16.xpose.msra.mxu0 0
        %778 = vmatprep.subr.bf16.mxu0 0
        %779 = vmatpush1.bf16.xpose.msra.mxu0 0
        %780 = vmatprep.subr.bf16.mxu0 0
        %781 = vmatpush1.bf16.xpose.msra.mxu0 0
        %782 = vmatprep.subr.bf16.mxu0 0
        %783 = vmatpush1.bf16.xpose.msra.mxu0 0
        %784 = vmatprep.subr.bf16.mxu0 0
        %785 = vmatpush1.bf16.xpose.msra.mxu0 0
        %786 = vmatprep.subr.bf16.mxu0 0
        %787 = vmatpush1.bf16.xpose.msra.mxu0 0
        %788 = vmatprep.mubr.bf16.mxu0 0
        %789 = vmatmul.mubr.bf16.gmra.mrb[0].mxu0 %v751
        %v790 = vpop.f32.mrb[0].mxu0
        %v791 = vadd.f32 0.0, %v790
        %v792 = vpop.f32.mrb[0].mxu0
        %v793 = vpop.f32.mrb[0].mxu0
        %v794 = vpop.f32.mrb[0].mxu0
        %795 = vdwg.mxu0
        %s796 = scalar_lea.vmem %s161, 16 [#allocation3]
        %797 = vst.msk [vmem:[%s796] sm:$0xff] %vm385, %v791
        %s798 = scalar_lea.vmem [#allocation2], 72
        %v799 = vld [vmem:[%s798] sm:$0xff]
        %v800 = vpack.c.bf16 %v799, %v799
        %s801 = scalar_lea.vmem [#allocation2], 80
        %v802 = vld [vmem:[%s801] sm:$0xff]
        %v803 = vpack.c.bf16 %v802, %v802
        %s804 = scalar_lea.vmem [#allocation2], 88
        %v805 = vld [vmem:[%s804] sm:$0xff]
        %v806 = vpack.c.bf16 %v805, %v805
        %807 = vxpose.xlu0.c.b16.start [1/8] %v800, 128
        %808 = vxpose.xlu0.c.b16.cont [2/8] 0, 128
        %809 = vxpose.xlu0.c.b16.cont [3/8] 0, 128
        %810 = vxpose.xlu0.c.b16.cont [4/8] 0, 128
        %811 = vxpose.xlu0.c.b16.cont [5/8] 0, 128
        %812 = vxpose.xlu0.c.b16.cont [6/8] 0, 128
        %813 = vxpose.xlu0.c.b16.cont [7/8] 0, 128
        %814 = vxpose.xlu0.c.b16.end [8/8] 0, 128
        %v815 = vpop.trf.xlu0
        %v816 = vpop.trf.xlu0
        %v817 = vpop.trf.xlu0
        %v818 = vpop.trf.xlu0
        %v819 = vpop.trf.xlu0
        %v820 = vpop.trf.xlu0
        %v821 = vpop.trf.xlu0
        %v822 = vpop.trf.xlu0
        %v824 = vsel %vm385, %v815, 0
        %v827 = vsel %vm430, %v803, 0
        %829 = vmatprep.subr.bf16.mxu0 0
        %830 = vmatpush1.bf16.msra.mxu0 %v827
        %831 = vmatprep.subr.bf16.mxu0 0
        %832 = vmatpush1.bf16.msra.mxu0 0
        %833 = vmatprep.subr.bf16.mxu0 0
        %834 = vmatpush1.bf16.msra.mxu0 0
        %835 = vmatprep.subr.bf16.mxu0 0
        %836 = vmatpush1.bf16.msra.mxu0 0
        %837 = vmatprep.subr.bf16.mxu0 0
        %838 = vmatpush1.bf16.msra.mxu0 0
        %839 = vmatprep.subr.bf16.mxu0 0
        %840 = vmatpush1.bf16.msra.mxu0 0
        %841 = vmatprep.subr.bf16.mxu0 0
        %842 = vmatpush1.bf16.msra.mxu0 0
        %843 = vmatprep.subr.bf16.mxu0 0
        %844 = vmatpush1.bf16.msra.mxu0 0
        %845 = vmatprep.subr.bf16.mxu0 0
        %846 = vmatpush1.bf16.msra.mxu0 0
        %847 = vmatprep.subr.bf16.mxu0 0
        %848 = vmatpush1.bf16.msra.mxu0 0
        %849 = vmatprep.subr.bf16.mxu0 0
        %850 = vmatpush1.bf16.msra.mxu0 0
        %851 = vmatprep.subr.bf16.mxu0 0
        %852 = vmatpush1.bf16.msra.mxu0 0
        %853 = vmatprep.subr.bf16.mxu0 0
        %854 = vmatpush1.bf16.msra.mxu0 0
        %855 = vmatprep.subr.bf16.mxu0 0
        %856 = vmatpush1.bf16.msra.mxu0 0
        %857 = vmatprep.subr.bf16.mxu0 0
        %858 = vmatpush1.bf16.msra.mxu0 0
        %859 = vmatprep.subr.bf16.mxu0 0
        %860 = vmatpush1.bf16.msra.mxu0 0
        %861 = vmatprep.mubr.bf16.mxu0 0
        %862 = vmatmul.mubr.bf16.gmra.mrb[0].mxu0 %v824
        %v863 = vpop.f32.mrb[0].mxu0
        %v864 = vadd.f32 0.0, %v863
        %v865 = vpop.f32.mrb[0].mxu0
        %v866 = vpop.f32.mrb[0].mxu0
        %v867 = vpop.f32.mrb[0].mxu0
        %868 = vdwg.mxu0
        %v869 = vsel %vm402, %v864, -1e+30
        %v870 = vsel %vm385, %v869, -inf
        %871 = vmax.xlane.f32.xlu0 %v870
        %v872 = vpop.xlane.xlu0 %871
        %v873 = vsub.f32 %v869, %v872
        %v874 = vmul.f32 %v873, 1.442695
        %v875 = vpow.pop %v874
        %v876 = vsel %vm385, %v875, 0.0
        %877 = vadd.xlane.f32.xlu0 %v876
        %v878 = vpop.xlane.xlu0 %877
        %v879 = vrcp.pop %v878
        %v880 = vmul.f32 %v875, %v879
        %v881 = vpack.c.bf16 %v880, %v880
        %v883 = vsel %vm385, %v806, 0
        %v886 = vsel %vm385, %v881, 0
        %888 = vmatprep.subr.bf16.mxu0 0
        %889 = vmatpush1.bf16.xpose.msra.mxu0 %v886
        %890 = vmatprep.subr.bf16.mxu0 0
        %891 = vmatpush1.bf16.xpose.msra.mxu0 0
        %892 = vmatprep.subr.bf16.mxu0 0
        %893 = vmatpush1.bf16.xpose.msra.mxu0 0
        %894 = vmatprep.subr.bf16.mxu0 0
        %895 = vmatpush1.bf16.xpose.msra.mxu0 0
        %896 = vmatprep.subr.bf16.mxu0 0
        %897 = vmatpush1.bf16.xpose.msra.mxu0 0
        %898 = vmatprep.subr.bf16.mxu0 0
        %899 = vmatpush1.bf16.xpose.msra.mxu0 0
        %900 = vmatprep.subr.bf16.mxu0 0
        %901 = vmatpush1.bf16.xpose.msra.mxu0 0
        %902 = vmatprep.subr.bf16.mxu0 0
        %903 = vmatpush1.bf16.xpose.msra.mxu0 0
        %904 = vmatprep.subr.bf16.mxu0 0
        %905 = vmatpush1.bf16.xpose.msra.mxu0 0
        %906 = vmatprep.subr.bf16.mxu0 0
        %907 = vmatpush1.bf16.xpose.msra.mxu0 0
        %908 = vmatprep.subr.bf16.mxu0 0
        %909 = vmatpush1.bf16.xpose.msra.mxu0 0
        %910 = vmatprep.subr.bf16.mxu0 0
        %911 = vmatpush1.bf16.xpose.msra.mxu0 0
        %912 = vmatprep.subr.bf16.mxu0 0
        %913 = vmatpush1.bf16.xpose.msra.mxu0 0
        %914 = vmatprep.subr.bf16.mxu0 0
        %915 = vmatpush1.bf16.xpose.msra.mxu0 0
        %916 = vmatprep.subr.bf16.mxu0 0
        %917 = vmatpush1.bf16.xpose.msra.mxu0 0
        %918 = vmatprep.subr.bf16.mxu0 0
        %919 = vmatpush1.bf16.xpose.msra.mxu0 0
        %920 = vmatprep.mubr.bf16.mxu0 0
        %921 = vmatmul.mubr.bf16.gmra.mrb[0].mxu0 %v883
        %v922 = vpop.f32.mrb[0].mxu0
        %v923 = vadd.f32 0.0, %v922
        %v924 = vpop.f32.mrb[0].mxu0
        %v925 = vpop.f32.mrb[0].mxu0
        %v926 = vpop.f32.mrb[0].mxu0
        %927 = vdwg.mxu0
        %s928 = scalar_lea.vmem %s161, 24 [#allocation3]
        %929 = vst.msk [vmem:[%s928] sm:$0xff] %vm385, %v923
        %s930 = sand.u32 %s93, 1
        %s931 = scalar_lea.sflag [#allocation4], %s930
        %s932 = sand.u32 %s93, 1
        %s933 = smul.addr %s932, 32
        %s934 = scalar_lea.vmem [#allocation3], %s933
        // Predicated region
        $region33: #{tpu_custom_call.1} parent=31 // pred_check
          %p935 = pneg %p103
        $region34: #{tpu_custom_call.1} parent=31 // pred_check_branch
          %937 = sbr.rel (%p935) target = $region36
        $region35: #{tpu_custom_call.1} parent=31 // pred_region
          %s939 = ssub.s32 512, 512
          %940 = vsyncadd %s931, %s939
          %s941 = smul.addr %s17, 4
          %s942 = smul.addr %s941, 128
          %s943 = scalar_lea.hbm %s3, %s942
          %s944 = sshll.u32 %s934, 4
          %s945 = int_to_ptr.vmem [resolvable:$true] %s944
          %950 = dma.vmem_to_hbm [thread:$0]  %s945, 512, %s943, %s931, 128, 128, 8
        $region36: #{tpu_custom_call.1} parent=31 // pred_fallthru
          _
      $region32: #{tpu_custom_call.1} parent=5 // pred_fallthru
        _
      %p951 = scmp.le.s32.totalorder 2, %s12
      // Predicated region
      $region37: #{tpu_custom_call.1} parent=5 // pred_check
        %p952 = pneg %p951
      $region38: #{tpu_custom_call.1} parent=5 // pred_check_branch
        %954 = sbr.rel (%p952) target = $region40
      $region39: #{tpu_custom_call.1} parent=5 // pred_region
        %s955 = ssub.s32 %s12, 2
        // Predicated region
        $region41: #{tpu_custom_call.1} parent=39 // pred_check
          %p956 = pneg %p109
        $region42: #{tpu_custom_call.1} parent=39 // pred_check_branch
          %958 = sbr.rel (%p956) target = $region44
        $region43: #{tpu_custom_call.1} parent=39 // pred_region
          %s959 = sand.u32 %s94, 1
          %s960 = scalar_lea.sflag [#allocation4], %s959
          %s961 = sand.u32 %s94, 1
          %s962 = smul.addr %s961, 32
          %s963 = scalar_lea.vmem [#allocation3], %s962
          %964 = dma.done %s960, 512
        $region44: #{tpu_custom_call.1} parent=39 // pred_fallthru
          _
      $region40: #{tpu_custom_call.1} parent=5 // pred_fallthru
        _
    $region6: #{tpu_custom_call.1} parent=1 // loop_footer
      %s16 = sadd.s32 1, %s12
    $region7: #{tpu_custom_call.1} parent=1 // loop_footer_branch
      %11 = sbr.rel target = $region3
    $region8: #{tpu_custom_call.1} parent=1 // loop_exit
      _
    %965 = vsyncpa [#allocation4], 1
    %s966 = scalar_lea.sflag [#allocation4], 1
    %967 = vsyncpa %s966, 1

</llo_original>
